<compile_context>
chip_gen: v5e
topology: v5e:2x2
jax: 0.10.0
libtpu: 0.0.40
codegen_flags: <defaults>
</compile_context>

<pallas_src>
import functools

import jax
import jax.numpy as jnp
from jax.experimental import pallas as pl
from jax.experimental.pallas import tpu as pltpu

LANE = 128      # vreg lane width: batch tiles and hidden width padded to this
SUBLANE = 8


def _round_up(n, m):
    return ((n + m - 1) // m) * m


def mlp_kernel(x_ref, w1_ref, b1_ref, wh_ref, bh_ref, w2_ref, b2_ref, o_ref,
               *, n_hidden):
    """One batch tile of MyNet.forward, feature-major layout.

    x_ref : (1, TB)    input row (batch along lanes)
    w1_ref: (Wp, 1)    fc1 weight column  (PyTorch (out=W, in=1)), zero-padded
    b1_ref: (Wp, 1)    fc1 bias column, zero-padded
    wh_ref: (Wp, Wp)   shared hidden layer weight (PyTorch (out, in)), zero-padded
    bh_ref: (Wp, 1)    hidden bias column, zero-padded
    w2_ref: (Wp, 1)    fc2 weight column (PyTorch (1, W) transposed), zero-padded
    b2_ref: (1, 1)     fc2 bias
    o_ref : (1, TB)    lane-dense output row (one scalar per batch element)
    """
    tb = x_ref.shape[1]
    wp = w1_ref.shape[0]

    # Hoisted bias broadcasts (built once, reused by every unrolled layer).
    b1_b = jnp.broadcast_to(b1_ref[...], (wp, tb))
    bh_b = jnp.broadcast_to(bh_ref[...], (wp, tb))

    # fc1 (contraction depth K == 1): VPU broadcast outer product + ReLU.
    h = jnp.maximum(w1_ref[...] * x_ref[...] + b1_b, 0.0)          # (Wp, TB)

    # (hidden_num - 1) applications of the SAME hidden layer + ReLU.
    # n_hidden is static -> fully unrolled so the LLO scheduler sees all matmuls.
    for _ in range(n_hidden - 1):
        z = jnp.dot(wh_ref[...], h, preferred_element_type=jnp.float32)  # MXU
        h = jnp.maximum(z + bh_b, 0.0)

    # fc2 (output width N == 1): VPU multiply + cross-sublane reduction (XLU).
    out = jnp.sum(h * w2_ref[...], axis=0, keepdims=True) + b2_ref[...]  # (1, TB)

    # Lane-dense, unmasked store of exactly the useful data.
    o_ref[...] = out.astype(o_ref.dtype)


def mynet_forward(x, padded_params, hidden_num, *, tile_b=512):
    """x: (B, 1) float32. padded_params: output of pad_params() (lane-padded)."""
    w1, b1, wh, bh, w2, b2 = (padded_params["w1"], padded_params["b1"],
                              padded_params["wh"], padded_params["bh"],
                              padded_params["w2"], padded_params["b2"])
    B = x.shape[0]

    # Feature-major: batch along the lane axis -> (1, B) row.
    xt = x.reshape(1, B)

    # Batch tiling: lane-dense tiles, grid over batch tiles ("parallel" lets v7x
    # shard tiles across its two TensorCores). Weights stay VMEM-resident.
    tb = min(_round_up(tile_b, LANE), _round_up(B, LANE))
    Bp = _round_up(B, tb)
    if Bp != B:
        xt = jnp.pad(xt, ((0, 0), (0, Bp - B)))
    grid = (Bp // tb,)

    kernel = functools.partial(mlp_kernel, n_hidden=hidden_num)

    def resident(a):
        # Same block for every grid step -> loaded once, stays VMEM-resident.
        return pl.BlockSpec(a.shape, lambda i: (0, 0))

    out = pl.pallas_call(
        kernel,
        out_shape=jax.ShapeDtypeStruct((1, Bp), jnp.float32),
        grid=grid,
        in_specs=[
            pl.BlockSpec((1, tb), lambda i: (0, i)),          # x: streamed, lane-dense
            resident(w1), resident(b1), resident(wh),
            resident(bh), resident(w2), resident(b2),
        ],
        out_specs=pl.BlockSpec((1, tb), lambda i: (0, i)),    # lane-dense output row
        compiler_params=pltpu.CompilerParams(
            dimension_semantics=("parallel",)),
    )(xt, w1, b1, wh, bh, w2, b2)

    return out[0, :B].reshape(B, 1)


def init_params(key, hidden_width):
    """Deterministic init mimicking PyTorch Linear's U(-1/sqrt(fan_in), +1/sqrt(fan_in)).
    Weights are kept in PyTorch (out_features, in_features) orientation."""
    ks = jax.random.split(key, 6)

    def unif(k, shape, fan_in):
        bound = 1.0 / jnp.sqrt(float(fan_in))
        return jax.random.uniform(k, shape, jnp.float32, -bound, bound)

    W = hidden_width
    return {
        "w1": unif(ks[0], (W, 1), 1),    # fc1.weight
        "b1": unif(ks[1], (W,), 1),      # fc1.bias
        "wh": unif(ks[2], (W, W), W),    # hidden_layer.weight
        "bh": unif(ks[3], (W,), W),      # hidden_layer.bias
        "w2": unif(ks[4], (1, W), W),    # fc2.weight
        "b2": unif(ks[5], (1,), W),      # fc2.bias
    }


def pad_params(params, lane=LANE):
    """Zero-pad the hidden dimension to a full 128 width on the host and reshape
    biases / fc2 weight into columns for the feature-major kernel. Padded
    rows/cols carry exact zeros through fc1/ReLU/hidden layers and contribute
    nothing to fc2, so the padding is mathematically a no-op."""
    W = params["w1"].shape[0]
    pw = _round_up(W, lane) - W
    return {
        "w1": jnp.pad(params["w1"], ((0, pw), (0, 0))),                   # (Wp, 1)
        "b1": jnp.pad(params["b1"].reshape(W, 1), ((0, pw), (0, 0))),     # (Wp, 1)
        "wh": jnp.pad(params["wh"], ((0, pw), (0, pw))),                  # (Wp, Wp)
        "bh": jnp.pad(params["bh"].reshape(W, 1), ((0, pw), (0, 0))),     # (Wp, 1)
        "w2": jnp.pad(params["w2"].T, ((0, pw), (0, 0))),                 # (Wp, 1)
        "b2": params["b2"].reshape(1, 1),                                 # (1, 1)
    }


def mynet_reference(x, params, hidden_num):
    """Pure-JAX reference on the unpadded PyTorch-layout params. fc1 (in==1) and
    fc2 (out==1) are written elementwise, which is mathematically identical to
    nn.Linear and keeps the check independent of the backend's default matmul
    precision for degenerate-dimension dots."""
    h = jnp.maximum(x * params["w1"].T + params["b1"], 0.0)          # (B, W)
    for _ in range(hidden_num - 1):
        h = jnp.maximum(h @ params["wh"].T + params["bh"], 0.0)
    return jnp.sum(h * params["w2"], axis=-1, keepdims=True) + params["b2"]


if __name__ == "__main__":
    hidden_num = 3
    hidden_width = 32
    batch = 8

    key = jax.random.PRNGKey(0)
    k_x, k_p = jax.random.split(key)
    x = jax.random.normal(k_x, (batch, 1), jnp.float32)

    params = init_params(k_p, hidden_width)
    padded = pad_params(params)

    out = mynet_forward(x, padded, hidden_num)
    out = jax.block_until_ready(out)

    ref = mynet_reference(x, params, hidden_num)
    assert out.shape == (batch, 1)
    assert jnp.allclose(out, ref, atol=1e-5, rtol=1e-5), float(jnp.max(jnp.abs(out - ref)))

    print("KERNEL_OK")
</pallas_src>

<mosaic_0001>
module attributes {stable_mosaic.version = 11 : i64} {
  func.func @mlp_kernel(%arg0: i32, %arg1: memref<1x128xf32, #tpu.memory_space<vmem>>, %arg2: memref<128x1xf32, #tpu.memory_space<vmem>>, %arg3: memref<128x1xf32, #tpu.memory_space<vmem>>, %arg4: memref<128x128xf32, #tpu.memory_space<vmem>>, %arg5: memref<128x1xf32, #tpu.memory_space<vmem>>, %arg6: memref<128x1xf32, #tpu.memory_space<vmem>>, %arg7: memref<1x1xf32, #tpu.memory_space<vmem>>, %arg8: memref<1x128xf32, #tpu.memory_space<vmem>>) attributes {dimension_semantics = [#tpu.dimension_semantics<parallel>], iteration_bounds = array<i64: 1>, scalar_prefetch = 0 : i64, scratch_operands = 0 : i64, tpu.core_type = #tpu.core_type<tc>, window_params = [{transform_indices = @transform_0, window_bounds = array<i64: 1, 128>}, {pipeline_mode = #tpu.pipeline_mode<synchronous>, transform_indices = @transform_1, window_bounds = array<i64: 128, 1>}, {pipeline_mode = #tpu.pipeline_mode<synchronous>, transform_indices = @transform_2, window_bounds = array<i64: 128, 1>}, {pipeline_mode = #tpu.pipeline_mode<synchronous>, transform_indices = @transform_3, window_bounds = array<i64: 128, 128>}, {pipeline_mode = #tpu.pipeline_mode<synchronous>, transform_indices = @transform_4, window_bounds = array<i64: 128, 1>}, {pipeline_mode = #tpu.pipeline_mode<synchronous>, transform_indices = @transform_5, window_bounds = array<i64: 128, 1>}, {pipeline_mode = #tpu.pipeline_mode<synchronous>, transform_indices = @transform_6, window_bounds = array<i64: 1, 1>}, {transform_indices = @transform_7, window_bounds = array<i64: 1, 128>}]} {
    %c0 = arith.constant 0 : index
    %c0_0 = arith.constant 0 : index
    %0 = vector.load %arg3[%c0, %c0_0] : memref<128x1xf32, #tpu.memory_space<vmem>>, vector<128x1xf32>
    %1 = vector.shape_cast %0 : vector<128x1xf32> to vector<128x1xf32>
    %2 = vector.broadcast %1 : vector<128x1xf32> to vector<128x128xf32>
    %c0_1 = arith.constant 0 : index
    %c0_2 = arith.constant 0 : index
    %3 = vector.load %arg5[%c0_1, %c0_2] : memref<128x1xf32, #tpu.memory_space<vmem>>, vector<128x1xf32>
    %4 = vector.shape_cast %3 : vector<128x1xf32> to vector<128x1xf32>
    %5 = vector.broadcast %4 : vector<128x1xf32> to vector<128x128xf32>
    %c0_3 = arith.constant 0 : index
    %c0_4 = arith.constant 0 : index
    %6 = vector.load %arg2[%c0_3, %c0_4] : memref<128x1xf32, #tpu.memory_space<vmem>>, vector<128x1xf32>
    %c0_5 = arith.constant 0 : index
    %c0_6 = arith.constant 0 : index
    %7 = vector.load %arg1[%c0_5, %c0_6] : memref<1x128xf32, #tpu.memory_space<vmem>>, vector<1x128xf32>
    %8 = vector.broadcast %6 : vector<128x1xf32> to vector<128x128xf32>
    %9 = vector.broadcast %7 : vector<1x128xf32> to vector<128x128xf32>
    %10 = arith.mulf %8, %9 : vector<128x128xf32>
    %11 = arith.addf %10, %2 : vector<128x128xf32>
    %cst = arith.constant 0.000000e+00 : f32
    %12 = vector.broadcast %cst : f32 to vector<128x128xf32>
    %13 = arith.maximumf %11, %12 : vector<128x128xf32>
    %c0_7 = arith.constant 0 : index
    %c0_8 = arith.constant 0 : index
    %14 = vector.load %arg4[%c0_7, %c0_8] : memref<128x128xf32, #tpu.memory_space<vmem>>, vector<128x128xf32>
    %cst_9 = arith.constant dense<0.000000e+00> : vector<128x128xf32>
    %15 = tpu.matmul %14, %13, %cst_9 {dimension_numbers = #tpu.dot_dimension_numbers<[1], [0], [0], [1], [0, 0, 1, 1], [], []>} : vector<128x128xf32>, vector<128x128xf32>, vector<128x128xf32> -> vector<128x128xf32>
    %16 = arith.addf %15, %5 : vector<128x128xf32>
    %cst_10 = arith.constant 0.000000e+00 : f32
    %17 = vector.broadcast %cst_10 : f32 to vector<128x128xf32>
    %18 = arith.maximumf %16, %17 : vector<128x128xf32>
    %c0_11 = arith.constant 0 : index
    %c0_12 = arith.constant 0 : index
    %19 = vector.load %arg4[%c0_11, %c0_12] : memref<128x128xf32, #tpu.memory_space<vmem>>, vector<128x128xf32>
    %cst_13 = arith.constant dense<0.000000e+00> : vector<128x128xf32>
    %20 = tpu.matmul %19, %18, %cst_13 {dimension_numbers = #tpu.dot_dimension_numbers<[1], [0], [0], [1], [0, 0, 1, 1], [], []>} : vector<128x128xf32>, vector<128x128xf32>, vector<128x128xf32> -> vector<128x128xf32>
    %21 = arith.addf %20, %5 : vector<128x128xf32>
    %cst_14 = arith.constant 0.000000e+00 : f32
    %22 = vector.broadcast %cst_14 : f32 to vector<128x128xf32>
    %23 = arith.maximumf %21, %22 : vector<128x128xf32>
    %c0_15 = arith.constant 0 : index
    %c0_16 = arith.constant 0 : index
    %24 = vector.load %arg6[%c0_15, %c0_16] : memref<128x1xf32, #tpu.memory_space<vmem>>, vector<128x1xf32>
    %25 = vector.broadcast %24 : vector<128x1xf32> to vector<128x128xf32>
    %26 = arith.mulf %23, %25 : vector<128x128xf32>
    %cst_17 = arith.constant dense<0.000000e+00> : vector<128xf32>
    %27 = vector.multi_reduction <add>, %26, %cst_17 [0] : vector<128x128xf32> to vector<128xf32>
    %28 = vector.shape_cast %27 : vector<128xf32> to vector<1x128xf32>
    %c0_18 = arith.constant 0 : index
    %c0_19 = arith.constant 0 : index
    %29 = vector.load %arg7[%c0_18, %c0_19] : memref<1x1xf32, #tpu.memory_space<vmem>>, vector<1x1xf32>
    %30 = vector.broadcast %29 : vector<1x1xf32> to vector<1x128xf32>
    %31 = arith.addf %28, %30 : vector<1x128xf32>
    %c0_20 = arith.constant 0 : index
    %c0_21 = arith.constant 0 : index
    %32 = vector.load %arg8[%c0_20, %c0_21] : memref<1x128xf32, #tpu.memory_space<vmem>>, vector<1x128xf32>
    tpu.vector_store %arg8[%c0_20, %c0_21], %31 {strides = array<i32>} : memref<1x128xf32, #tpu.memory_space<vmem>>, vector<1x128xf32>,
    return
  }
  func.func @transform_0(%arg0: i32) -> (i32, i32) {
    %c0_i32 = arith.constant 0 : i32
    %c0_i32_0 = arith.constant 0 : i32
    return %c0_i32, %arg0 : i32, i32
  }
  func.func @transform_1(%arg0: i32) -> (i32, i32) {
    %c0_i32 = arith.constant 0 : i32
    %c0_i32_0 = arith.constant 0 : i32
    %c0_i32_1 = arith.constant 0 : i32
    return %c0_i32, %c0_i32_0 : i32, i32
  }
  func.func @transform_2(%arg0: i32) -> (i32, i32) {
    %c0_i32 = arith.constant 0 : i32
    %c0_i32_0 = arith.constant 0 : i32
    %c0_i32_1 = arith.constant 0 : i32
    return %c0_i32, %c0_i32_0 : i32, i32
  }
  func.func @transform_3(%arg0: i32) -> (i32, i32) {
    %c0_i32 = arith.constant 0 : i32
    %c0_i32_0 = arith.constant 0 : i32
    %c0_i32_1 = arith.constant 0 : i32
    return %c0_i32, %c0_i32_0 : i32, i32
  }
  func.func @transform_4(%arg0: i32) -> (i32, i32) {
    %c0_i32 = arith.constant 0 : i32
    %c0_i32_0 = arith.constant 0 : i32
    %c0_i32_1 = arith.constant 0 : i32
    return %c0_i32, %c0_i32_0 : i32, i32
  }
  func.func @transform_5(%arg0: i32) -> (i32, i32) {
    %c0_i32 = arith.constant 0 : i32
    %c0_i32_0 = arith.constant 0 : i32
    %c0_i32_1 = arith.constant 0 : i32
    return %c0_i32, %c0_i32_0 : i32, i32
  }
  func.func @transform_6(%arg0: i32) -> (i32, i32) {
    %c0_i32 = arith.constant 0 : i32
    %c0_i32_0 = arith.constant 0 : i32
    %c0_i32_1 = arith.constant 0 : i32
    return %c0_i32, %c0_i32_0 : i32, i32
  }
  func.func @transform_7(%arg0: i32) -> (i32, i32) {
    %c0_i32 = arith.constant 0 : i32
    %c0_i32_0 = arith.constant 0 : i32
    return %c0_i32, %arg0 : i32, i32
  }
}

</mosaic_0001>

<llo_original>
// kernel: tpu_custom_call.1
$region0: #{tpu_custom_call.1}
  #allocation0 [shape = 'u32[]', space=smem, size = 0x4, offset = 0x4, fixed_abs, tag = 'smem constant byte address 0x4 - core index']
  #allocation1 [shape = 'u32[72,128]{1,0:T(1,128)}', space=vmem, size = 0x9000, scoped, tag = 'internal scratch']
  #allocation2 [shape = 'f32[1,1]{1,0:T(1,128)S(1)}', space=vmem, size = 0x200, scoped, tag = 'scoped memory for tpu_custom_call.1']
  %s0 = inlined_call_operand.vmem [shape: f32[1,128], index: 0, kind: input, shape index: {}]
  %s1 = inlined_call_operand.vmem [shape: f32[128,1], index: 1, kind: input, shape index: {}]
  %s2 = inlined_call_operand.vmem [shape: f32[128,1], index: 2, kind: input, shape index: {}]
  %s3 = inlined_call_operand.vmem [shape: f32[128,128], index: 3, kind: input, shape index: {}]
  %s4 = inlined_call_operand.vmem [shape: f32[128,1], index: 4, kind: input, shape index: {}]
  %s5 = inlined_call_operand.vmem [shape: f32[128,1], index: 5, kind: input, shape index: {}]
  %s6 = inlined_call_operand.<no memory space> [shape: f32[1,1], index: 6, kind: input, shape index: {}]
  %s7 = inlined_call_operand.hbm [shape: f32[1,128], index: 7, kind: output, shape index: {}]
  %s8 = sld [smem:[#allocation0]]
  $region38: #{tpu_custom_call.1} parent=0
    _
  %s10 = ssub.s32 1, %s8
  %s11 = scalar_select 0, %s10, %s8
  %v12 = vstv %s6
  %13 = vst [vmem:[#allocation2] sm:$0x1] %v12
  $region1: #{tpu_custom_call.1} parent=0
    #allocation3 [shape = 'u8[512]{0}', space=vmem, size = 0x400, scoped, tag = 'output window, operand 0, single buffered']
    #allocation4 [shape = 's32[1]{0}', space=sflag, size = 0x4, scoped, tag = 'scoped memory for tpu_custom_call.1']
    %14 = vsyncpa [#allocation4], 0
    // Predicated region
    $region2: #{tpu_custom_call.1} parent=1 // pred_check
      _
    $region3: #{tpu_custom_call.1} parent=1 // pred_check_branch
      %16 = sbr.rel (0) target = $region5
    $region4: #{tpu_custom_call.1} parent=1 // pred_region
      _
    $region5: #{tpu_custom_call.1} parent=1 // pred_fallthru
      _
    // Predicated region
    $region6: #{tpu_custom_call.1} parent=1 // pred_check
      _
    $region7: #{tpu_custom_call.1} parent=1 // pred_check_branch
      %18 = sbr.rel (0) target = $region9
    $region8: #{tpu_custom_call.1} parent=1 // pred_region
      _
    $region9: #{tpu_custom_call.1} parent=1 // pred_fallthru
      _
    // Predicated region
    $region10: #{tpu_custom_call.1} parent=1 // pred_check
      _
    $region11: #{tpu_custom_call.1} parent=1 // pred_check_branch
      %20 = sbr.rel (0) target = $region13
    $region12: #{tpu_custom_call.1} parent=1 // pred_region
      _
    $region13: #{tpu_custom_call.1} parent=1 // pred_fallthru
      _
    // Predicated region
    $region14: #{tpu_custom_call.1} parent=1 // pred_check
      _
    $region15: #{tpu_custom_call.1} parent=1 // pred_check_branch
      %22 = sbr.rel (0) target = $region17
    $region16: #{tpu_custom_call.1} parent=1 // pred_region
      _
    $region17: #{tpu_custom_call.1} parent=1 // pred_fallthru
      _
    // Predicated region
    $region18: #{tpu_custom_call.1} parent=1 // pred_check
      _
    $region19: #{tpu_custom_call.1} parent=1 // pred_check_branch
      %24 = sbr.rel (0) target = $region21
    $region20: #{tpu_custom_call.1} parent=1 // pred_region
      _
    $region21: #{tpu_custom_call.1} parent=1 // pred_fallthru
      _
    // Predicated region
    $region22: #{tpu_custom_call.1} parent=1 // pred_check
      _
    $region23: #{tpu_custom_call.1} parent=1 // pred_check_branch
      %26 = sbr.rel (0) target = $region25
    $region24: #{tpu_custom_call.1} parent=1 // pred_region
      _
    $region25: #{tpu_custom_call.1} parent=1 // pred_fallthru
      _
    // Predicated region
    $region26: #{tpu_custom_call.1} parent=1 // pred_check
      _
    $region27: #{tpu_custom_call.1} parent=1 // pred_check_branch
      %28 = sbr.rel (0) target = $region29
    $region28: #{tpu_custom_call.1} parent=1 // pred_region
      _
    $region29: #{tpu_custom_call.1} parent=1 // pred_fallthru
      _
    %v29 = vld [vmem:[%s2] sm:$0xff]
    %v30 = vld [vmem:[%s2 + $0x8] sm:$0xff]
    %v31 = vld [vmem:[%s2 + $0x10] sm:$0xff]
    %v32 = vld [vmem:[%s2 + $0x18] sm:$0xff]
    %v33 = vld [vmem:[%s2 + $0x20] sm:$0xff]
    %v34 = vld [vmem:[%s2 + $0x28] sm:$0xff]
    %v35 = vld [vmem:[%s2 + $0x30] sm:$0xff]
    %v36 = vld [vmem:[%s2 + $0x38] sm:$0xff]
    %v37 = vld [vmem:[%s2 + $0x40] sm:$0xff]
    %v38 = vld [vmem:[%s2 + $0x48] sm:$0xff]
    %v39 = vld [vmem:[%s2 + $0x50] sm:$0xff]
    %v40 = vld [vmem:[%s2 + $0x58] sm:$0xff]
    %v41 = vld [vmem:[%s2 + $0x60] sm:$0xff]
    %v42 = vld [vmem:[%s2 + $0x68] sm:$0xff]
    %v43 = vld [vmem:[%s2 + $0x70] sm:$0xff]
    %v44 = vld [vmem:[%s2 + $0x78] sm:$0xff]
    %46 = vset.pattern.permute.xlu0 0
    %47 = vperm.xlu0 %46, %v29
    %v48 = vpop.permute.xlu0 %47
    %51 = vset.pattern.permute.xlu0 0
    %52 = vperm.xlu0 %51, %v30
    %v53 = vpop.permute.xlu0 %52
    %56 = vset.pattern.permute.xlu0 0
    %57 = vperm.xlu0 %56, %v31
    %v58 = vpop.permute.xlu0 %57
    %61 = vset.pattern.permute.xlu0 0
    %62 = vperm.xlu0 %61, %v32
    %v63 = vpop.permute.xlu0 %62
    %66 = vset.pattern.permute.xlu0 0
    %67 = vperm.xlu0 %66, %v33
    %v68 = vpop.permute.xlu0 %67
    %71 = vset.pattern.permute.xlu0 0
    %72 = vperm.xlu0 %71, %v34
    %v73 = vpop.permute.xlu0 %72
    %76 = vset.pattern.permute.xlu0 0
    %77 = vperm.xlu0 %76, %v35
    %v78 = vpop.permute.xlu0 %77
    %81 = vset.pattern.permute.xlu0 0
    %82 = vperm.xlu0 %81, %v36
    %v83 = vpop.permute.xlu0 %82
    %86 = vset.pattern.permute.xlu0 0
    %87 = vperm.xlu0 %86, %v37
    %v88 = vpop.permute.xlu0 %87
    %91 = vset.pattern.permute.xlu0 0
    %92 = vperm.xlu0 %91, %v38
    %v93 = vpop.permute.xlu0 %92
    %96 = vset.pattern.permute.xlu0 0
    %97 = vperm.xlu0 %96, %v39
    %v98 = vpop.permute.xlu0 %97
    %101 = vset.pattern.permute.xlu0 0
    %102 = vperm.xlu0 %101, %v40
    %v103 = vpop.permute.xlu0 %102
    %106 = vset.pattern.permute.xlu0 0
    %107 = vperm.xlu0 %106, %v41
    %v108 = vpop.permute.xlu0 %107
    %111 = vset.pattern.permute.xlu0 0
    %112 = vperm.xlu0 %111, %v42
    %v113 = vpop.permute.xlu0 %112
    %116 = vset.pattern.permute.xlu0 0
    %117 = vperm.xlu0 %116, %v43
    %v118 = vpop.permute.xlu0 %117
    %121 = vset.pattern.permute.xlu0 0
    %122 = vperm.xlu0 %121, %v44
    %v123 = vpop.permute.xlu0 %122
    %v125 = vld [vmem:[%s4] sm:$0xff]
    %v126 = vld [vmem:[%s4 + $0x8] sm:$0xff]
    %v127 = vld [vmem:[%s4 + $0x10] sm:$0xff]
    %v128 = vld [vmem:[%s4 + $0x18] sm:$0xff]
    %v129 = vld [vmem:[%s4 + $0x20] sm:$0xff]
    %v130 = vld [vmem:[%s4 + $0x28] sm:$0xff]
    %v131 = vld [vmem:[%s4 + $0x30] sm:$0xff]
    %v132 = vld [vmem:[%s4 + $0x38] sm:$0xff]
    %v133 = vld [vmem:[%s4 + $0x40] sm:$0xff]
    %v134 = vld [vmem:[%s4 + $0x48] sm:$0xff]
    %v135 = vld [vmem:[%s4 + $0x50] sm:$0xff]
    %v136 = vld [vmem:[%s4 + $0x58] sm:$0xff]
    %v137 = vld [vmem:[%s4 + $0x60] sm:$0xff]
    %v138 = vld [vmem:[%s4 + $0x68] sm:$0xff]
    %v139 = vld [vmem:[%s4 + $0x70] sm:$0xff]
    %v140 = vld [vmem:[%s4 + $0x78] sm:$0xff]
    %142 = vset.pattern.permute.xlu0 0
    %143 = vperm.xlu0 %142, %v125
    %v144 = vpop.permute.xlu0 %143
    %147 = vset.pattern.permute.xlu0 0
    %148 = vperm.xlu0 %147, %v126
    %v149 = vpop.permute.xlu0 %148
    %152 = vset.pattern.permute.xlu0 0
    %153 = vperm.xlu0 %152, %v127
    %v154 = vpop.permute.xlu0 %153
    %157 = vset.pattern.permute.xlu0 0
    %158 = vperm.xlu0 %157, %v128
    %v159 = vpop.permute.xlu0 %158
    %162 = vset.pattern.permute.xlu0 0
    %163 = vperm.xlu0 %162, %v129
    %v164 = vpop.permute.xlu0 %163
    %167 = vset.pattern.permute.xlu0 0
    %168 = vperm.xlu0 %167, %v130
    %v169 = vpop.permute.xlu0 %168
    %172 = vset.pattern.permute.xlu0 0
    %173 = vperm.xlu0 %172, %v131
    %v174 = vpop.permute.xlu0 %173
    %177 = vset.pattern.permute.xlu0 0
    %178 = vperm.xlu0 %177, %v132
    %v179 = vpop.permute.xlu0 %178
    %182 = vset.pattern.permute.xlu0 0
    %183 = vperm.xlu0 %182, %v133
    %v184 = vpop.permute.xlu0 %183
    %187 = vset.pattern.permute.xlu0 0
    %188 = vperm.xlu0 %187, %v134
    %v189 = vpop.permute.xlu0 %188
    %192 = vset.pattern.permute.xlu0 0
    %193 = vperm.xlu0 %192, %v135
    %v194 = vpop.permute.xlu0 %193
    %197 = vset.pattern.permute.xlu0 0
    %198 = vperm.xlu0 %197, %v136
    %v199 = vpop.permute.xlu0 %198
    %202 = vset.pattern.permute.xlu0 0
    %203 = vperm.xlu0 %202, %v137
    %v204 = vpop.permute.xlu0 %203
    %207 = vset.pattern.permute.xlu0 0
    %208 = vperm.xlu0 %207, %v138
    %v209 = vpop.permute.xlu0 %208
    %212 = vset.pattern.permute.xlu0 0
    %213 = vperm.xlu0 %212, %v139
    %v214 = vpop.permute.xlu0 %213
    %217 = vset.pattern.permute.xlu0 0
    %218 = vperm.xlu0 %217, %v140
    %v219 = vpop.permute.xlu0 %218
    %v221 = vld [vmem:[%s1] sm:$0xff]
    %v222 = vld [vmem:[%s1 + $0x8] sm:$0xff]
    %v223 = vld [vmem:[%s1 + $0x10] sm:$0xff]
    %v224 = vld [vmem:[%s1 + $0x18] sm:$0xff]
    %v225 = vld [vmem:[%s1 + $0x20] sm:$0xff]
    %v226 = vld [vmem:[%s1 + $0x28] sm:$0xff]
    %v227 = vld [vmem:[%s1 + $0x30] sm:$0xff]
    %v228 = vld [vmem:[%s1 + $0x38] sm:$0xff]
    %v229 = vld [vmem:[%s1 + $0x40] sm:$0xff]
    %v230 = vld [vmem:[%s1 + $0x48] sm:$0xff]
    %v231 = vld [vmem:[%s1 + $0x50] sm:$0xff]
    %v232 = vld [vmem:[%s1 + $0x58] sm:$0xff]
    %v233 = vld [vmem:[%s1 + $0x60] sm:$0xff]
    %v234 = vld [vmem:[%s1 + $0x68] sm:$0xff]
    %v235 = vld [vmem:[%s1 + $0x70] sm:$0xff]
    %v236 = vld [vmem:[%s1 + $0x78] sm:$0xff]
    %v237 = vld [vmem:[%s0] sm:$0x1]
    %239 = vset.pattern.permute.xlu0 0
    %240 = vperm.xlu0 %239, %v221
    %v241 = vpop.permute.xlu0 %240
    %244 = vset.pattern.permute.xlu0 0
    %245 = vperm.xlu0 %244, %v222
    %v246 = vpop.permute.xlu0 %245
    %249 = vset.pattern.permute.xlu0 0
    %250 = vperm.xlu0 %249, %v223
    %v251 = vpop.permute.xlu0 %250
    %254 = vset.pattern.permute.xlu0 0
    %255 = vperm.xlu0 %254, %v224
    %v256 = vpop.permute.xlu0 %255
    %259 = vset.pattern.permute.xlu0 0
    %260 = vperm.xlu0 %259, %v225
    %v261 = vpop.permute.xlu0 %260
    %264 = vset.pattern.permute.xlu0 0
    %265 = vperm.xlu0 %264, %v226
    %v266 = vpop.permute.xlu0 %265
    %269 = vset.pattern.permute.xlu0 0
    %270 = vperm.xlu0 %269, %v227
    %v271 = vpop.permute.xlu0 %270
    %274 = vset.pattern.permute.xlu0 0
    %275 = vperm.xlu0 %274, %v228
    %v276 = vpop.permute.xlu0 %275
    %279 = vset.pattern.permute.xlu0 0
    %280 = vperm.xlu0 %279, %v229
    %v281 = vpop.permute.xlu0 %280
    %284 = vset.pattern.permute.xlu0 0
    %285 = vperm.xlu0 %284, %v230
    %v286 = vpop.permute.xlu0 %285
    %289 = vset.pattern.permute.xlu0 0
    %290 = vperm.xlu0 %289, %v231
    %v291 = vpop.permute.xlu0 %290
    %294 = vset.pattern.permute.xlu0 0
    %295 = vperm.xlu0 %294, %v232
    %v296 = vpop.permute.xlu0 %295
    %299 = vset.pattern.permute.xlu0 0
    %300 = vperm.xlu0 %299, %v233
    %v301 = vpop.permute.xlu0 %300
    %304 = vset.pattern.permute.xlu0 0
    %305 = vperm.xlu0 %304, %v234
    %v306 = vpop.permute.xlu0 %305
    %309 = vset.pattern.permute.xlu0 0
    %310 = vperm.xlu0 %309, %v235
    %v311 = vpop.permute.xlu0 %310
    %314 = vset.pattern.permute.xlu0 0
    %315 = vperm.xlu0 %314, %v236
    %v316 = vpop.permute.xlu0 %315
    %v319 = vperm.slane %v237, 0
    %v321 = vmul.f32 %v241, %v319
    %v322 = vmul.f32 %v246, %v319
    %v323 = vmul.f32 %v251, %v319
    %v324 = vmul.f32 %v256, %v319
    %v325 = vmul.f32 %v261, %v319
    %v326 = vmul.f32 %v266, %v319
    %v327 = vmul.f32 %v271, %v319
    %v328 = vmul.f32 %v276, %v319
    %v329 = vmul.f32 %v281, %v319
    %v330 = vmul.f32 %v286, %v319
    %v331 = vmul.f32 %v291, %v319
    %v332 = vmul.f32 %v296, %v319
    %v333 = vmul.f32 %v301, %v319
    %v334 = vmul.f32 %v306, %v319
    %v335 = vmul.f32 %v311, %v319
    %v336 = vmul.f32 %v316, %v319
    %v337 = vadd.f32 %v321, %v48
    %v338 = vadd.f32 %v322, %v53
    %v339 = vadd.f32 %v323, %v58
    %v340 = vadd.f32 %v324, %v63
    %v341 = vadd.f32 %v325, %v68
    %v342 = vadd.f32 %v326, %v73
    %v343 = vadd.f32 %v327, %v78
    %v344 = vadd.f32 %v328, %v83
    %v345 = vadd.f32 %v329, %v88
    %v346 = vadd.f32 %v330, %v93
    %v347 = vadd.f32 %v331, %v98
    %v348 = vadd.f32 %v332, %v103
    %v349 = vadd.f32 %v333, %v108
    %v350 = vadd.f32 %v334, %v113
    %v351 = vadd.f32 %v335, %v118
    %v352 = vadd.f32 %v336, %v123
    %v353 = vmax.f32 %v337, 0.0
    %v354 = vmax.f32 %v338, 0.0
    %v355 = vmax.f32 %v339, 0.0
    %v356 = vmax.f32 %v340, 0.0
    %v357 = vmax.f32 %v341, 0.0
    %v358 = vmax.f32 %v342, 0.0
    %v359 = vmax.f32 %v343, 0.0
    %v360 = vmax.f32 %v344, 0.0
    %v361 = vmax.f32 %v345, 0.0
    %v362 = vmax.f32 %v346, 0.0
    %v363 = vmax.f32 %v347, 0.0
    %v364 = vmax.f32 %v348, 0.0
    %v365 = vmax.f32 %v349, 0.0
    %v366 = vmax.f32 %v350, 0.0
    %v367 = vmax.f32 %v351, 0.0
    %v368 = vmax.f32 %v352, 0.0
    %v369 = vld [vmem:[%s3] sm:$0xff]
    %v370 = vld [vmem:[%s3 + $0x8] sm:$0xff]
    %v371 = vld [vmem:[%s3 + $0x10] sm:$0xff]
    %v372 = vld [vmem:[%s3 + $0x18] sm:$0xff]
    %v373 = vld [vmem:[%s3 + $0x20] sm:$0xff]
    %v374 = vld [vmem:[%s3 + $0x28] sm:$0xff]
    %v375 = vld [vmem:[%s3 + $0x30] sm:$0xff]
    %v376 = vld [vmem:[%s3 + $0x38] sm:$0xff]
    %v377 = vld [vmem:[%s3 + $0x40] sm:$0xff]
    %v378 = vld [vmem:[%s3 + $0x48] sm:$0xff]
    %v379 = vld [vmem:[%s3 + $0x50] sm:$0xff]
    %v380 = vld [vmem:[%s3 + $0x58] sm:$0xff]
    %v381 = vld [vmem:[%s3 + $0x60] sm:$0xff]
    %v382 = vld [vmem:[%s3 + $0x68] sm:$0xff]
    %v383 = vld [vmem:[%s3 + $0x70] sm:$0xff]
    %v384 = vld [vmem:[%s3 + $0x78] sm:$0xff]
    %385 = vmatpush.msra.mxu0 %v368
    %386 = vmatpush.msra.mxu0 %v367
    %387 = vmatpush.msra.mxu0 %v366
    %388 = vmatpush.msra.mxu0 %v365
    %389 = vmatpush.msra.mxu0 %v364
    %390 = vmatpush.msra.mxu0 %v363
    %391 = vmatpush.msra.mxu0 %v362
    %392 = vmatpush.msra.mxu0 %v361
    %393 = vmatpush.msra.mxu0 %v360
    %394 = vmatpush.msra.mxu0 %v359
    %395 = vmatpush.msra.mxu0 %v358
    %396 = vmatpush.msra.mxu0 %v357
    %397 = vmatpush.msra.mxu0 %v356
    %398 = vmatpush.msra.mxu0 %v355
    %399 = vmatpush.msra.mxu0 %v354
    %400 = vmatpush.msra.mxu0 %v353
    %401 = vmatmul.f32.gmra.mxu0 %v369
    %v402 = vpop.f32.mrf.mxu0
    %v403 = vadd.f32 %v144, %v402
    %404 = vmatmul.f32.gmra.mxu0 %v370
    %v405 = vpop.f32.mrf.mxu0
    %v406 = vadd.f32 %v149, %v405
    %407 = vmatmul.f32.gmra.mxu0 %v371
    %v408 = vpop.f32.mrf.mxu0
    %v409 = vadd.f32 %v154, %v408
    %410 = vmatmul.f32.gmra.mxu0 %v372
    %v411 = vpop.f32.mrf.mxu0
    %v412 = vadd.f32 %v159, %v411
    %413 = vmatmul.f32.gmra.mxu0 %v373
    %v414 = vpop.f32.mrf.mxu0
    %v415 = vadd.f32 %v164, %v414
    %416 = vmatmul.f32.gmra.mxu0 %v374
    %v417 = vpop.f32.mrf.mxu0
    %v418 = vadd.f32 %v169, %v417
    %419 = vmatmul.f32.gmra.mxu0 %v375
    %v420 = vpop.f32.mrf.mxu0
    %v421 = vadd.f32 %v174, %v420
    %422 = vmatmul.f32.gmra.mxu0 %v376
    %v423 = vpop.f32.mrf.mxu0
    %v424 = vadd.f32 %v179, %v423
    %425 = vmatmul.f32.gmra.mxu0 %v377
    %v426 = vpop.f32.mrf.mxu0
    %v427 = vadd.f32 %v184, %v426
    %428 = vmatmul.f32.gmra.mxu0 %v378
    %v429 = vpop.f32.mrf.mxu0
    %v430 = vadd.f32 %v189, %v429
    %431 = vmatmul.f32.gmra.mxu0 %v379
    %v432 = vpop.f32.mrf.mxu0
    %v433 = vadd.f32 %v194, %v432
    %434 = vmatmul.f32.gmra.mxu0 %v380
    %v435 = vpop.f32.mrf.mxu0
    %v436 = vadd.f32 %v199, %v435
    %437 = vmatmul.f32.gmra.mxu0 %v381
    %v438 = vpop.f32.mrf.mxu0
    %v439 = vadd.f32 %v204, %v438
    %440 = vmatmul.f32.gmra.mxu0 %v382
    %v441 = vpop.f32.mrf.mxu0
    %v442 = vadd.f32 %v209, %v441
    %443 = vmatmul.f32.gmra.mxu0 %v383
    %v444 = vpop.f32.mrf.mxu0
    %v445 = vadd.f32 %v214, %v444
    %446 = vmatmul.f32.gmra.mxu0 %v384
    %v447 = vpop.f32.mrf.mxu0
    %v448 = vadd.f32 %v219, %v447
    %449 = vdwg.mxu0
    %v450 = vmax.f32 %v403, 0.0
    %v451 = vmax.f32 %v406, 0.0
    %v452 = vmax.f32 %v409, 0.0
    %v453 = vmax.f32 %v412, 0.0
    %v454 = vmax.f32 %v415, 0.0
    %v455 = vmax.f32 %v418, 0.0
    %v456 = vmax.f32 %v421, 0.0
    %v457 = vmax.f32 %v424, 0.0
    %v458 = vmax.f32 %v427, 0.0
    %v459 = vmax.f32 %v430, 0.0
    %v460 = vmax.f32 %v433, 0.0
    %v461 = vmax.f32 %v436, 0.0
    %v462 = vmax.f32 %v439, 0.0
    %v463 = vmax.f32 %v442, 0.0
    %v464 = vmax.f32 %v445, 0.0
    %v465 = vmax.f32 %v448, 0.0
    %466 = vmatpush.msra.mxu0 %v465
    %467 = vmatpush.msra.mxu0 %v464
    %468 = vmatpush.msra.mxu0 %v463
    %469 = vmatpush.msra.mxu0 %v462
    %470 = vmatpush.msra.mxu0 %v461
    %471 = vmatpush.msra.mxu0 %v460
    %472 = vmatpush.msra.mxu0 %v459
    %473 = vmatpush.msra.mxu0 %v458
    %474 = vmatpush.msra.mxu0 %v457
    %475 = vmatpush.msra.mxu0 %v456
    %476 = vmatpush.msra.mxu0 %v455
    %477 = vmatpush.msra.mxu0 %v454
    %478 = vmatpush.msra.mxu0 %v453
    %479 = vmatpush.msra.mxu0 %v452
    %480 = vmatpush.msra.mxu0 %v451
    %481 = vmatpush.msra.mxu0 %v450
    %482 = vmatmul.f32.gmra.mxu0 %v369
    %v483 = vpop.f32.mrf.mxu0
    %v484 = vadd.f32 %v144, %v483
    %485 = vmatmul.f32.gmra.mxu0 %v370
    %v486 = vpop.f32.mrf.mxu0
    %v487 = vadd.f32 %v149, %v486
    %488 = vmatmul.f32.gmra.mxu0 %v371
    %v489 = vpop.f32.mrf.mxu0
    %v490 = vadd.f32 %v154, %v489
    %491 = vmatmul.f32.gmra.mxu0 %v372
    %v492 = vpop.f32.mrf.mxu0
    %v493 = vadd.f32 %v159, %v492
    %494 = vmatmul.f32.gmra.mxu0 %v373
    %v495 = vpop.f32.mrf.mxu0
    %v496 = vadd.f32 %v164, %v495
    %497 = vmatmul.f32.gmra.mxu0 %v374
    %v498 = vpop.f32.mrf.mxu0
    %v499 = vadd.f32 %v169, %v498
    %500 = vmatmul.f32.gmra.mxu0 %v375
    %v501 = vpop.f32.mrf.mxu0
    %v502 = vadd.f32 %v174, %v501
    %503 = vmatmul.f32.gmra.mxu0 %v376
    %v504 = vpop.f32.mrf.mxu0
    %v505 = vadd.f32 %v179, %v504
    %506 = vmatmul.f32.gmra.mxu0 %v377
    %v507 = vpop.f32.mrf.mxu0
    %v508 = vadd.f32 %v184, %v507
    %509 = vmatmul.f32.gmra.mxu0 %v378
    %v510 = vpop.f32.mrf.mxu0
    %v511 = vadd.f32 %v189, %v510
    %512 = vmatmul.f32.gmra.mxu0 %v379
    %v513 = vpop.f32.mrf.mxu0
    %v514 = vadd.f32 %v194, %v513
    %515 = vmatmul.f32.gmra.mxu0 %v380
    %v516 = vpop.f32.mrf.mxu0
    %v517 = vadd.f32 %v199, %v516
    %518 = vmatmul.f32.gmra.mxu0 %v381
    %v519 = vpop.f32.mrf.mxu0
    %v520 = vadd.f32 %v204, %v519
    %521 = vmatmul.f32.gmra.mxu0 %v382
    %v522 = vpop.f32.mrf.mxu0
    %v523 = vadd.f32 %v209, %v522
    %524 = vmatmul.f32.gmra.mxu0 %v383
    %v525 = vpop.f32.mrf.mxu0
    %v526 = vadd.f32 %v214, %v525
    %527 = vmatmul.f32.gmra.mxu0 %v384
    %v528 = vpop.f32.mrf.mxu0
    %v529 = vadd.f32 %v219, %v528
    %530 = vdwg.mxu0
    %v531 = vmax.f32 %v484, 0.0
    %v532 = vmax.f32 %v487, 0.0
    %v533 = vmax.f32 %v490, 0.0
    %v534 = vmax.f32 %v493, 0.0
    %v535 = vmax.f32 %v496, 0.0
    %v536 = vmax.f32 %v499, 0.0
    %v537 = vmax.f32 %v502, 0.0
    %v538 = vmax.f32 %v505, 0.0
    %v539 = vmax.f32 %v508, 0.0
    %v540 = vmax.f32 %v511, 0.0
    %v541 = vmax.f32 %v514, 0.0
    %v542 = vmax.f32 %v517, 0.0
    %v543 = vmax.f32 %v520, 0.0
    %v544 = vmax.f32 %v523, 0.0
    %v545 = vmax.f32 %v526, 0.0
    %v546 = vmax.f32 %v529, 0.0
    %v547 = vld [vmem:[%s5] sm:$0xff]
    %v548 = vld [vmem:[%s5 + $0x8] sm:$0xff]
    %v549 = vld [vmem:[%s5 + $0x10] sm:$0xff]
    %v550 = vld [vmem:[%s5 + $0x18] sm:$0xff]
    %v551 = vld [vmem:[%s5 + $0x20] sm:$0xff]
    %v552 = vld [vmem:[%s5 + $0x28] sm:$0xff]
    %v553 = vld [vmem:[%s5 + $0x30] sm:$0xff]
    %v554 = vld [vmem:[%s5 + $0x38] sm:$0xff]
    %v555 = vld [vmem:[%s5 + $0x40] sm:$0xff]
    %v556 = vld [vmem:[%s5 + $0x48] sm:$0xff]
    %v557 = vld [vmem:[%s5 + $0x50] sm:$0xff]
    %v558 = vld [vmem:[%s5 + $0x58] sm:$0xff]
    %v559 = vld [vmem:[%s5 + $0x60] sm:$0xff]
    %v560 = vld [vmem:[%s5 + $0x68] sm:$0xff]
    %v561 = vld [vmem:[%s5 + $0x70] sm:$0xff]
    %v562 = vld [vmem:[%s5 + $0x78] sm:$0xff]
    %564 = vset.pattern.permute.xlu0 0
    %565 = vperm.xlu0 %564, %v547
    %v566 = vpop.permute.xlu0 %565
    %569 = vset.pattern.permute.xlu0 0
    %570 = vperm.xlu0 %569, %v548
    %v571 = vpop.permute.xlu0 %570
    %574 = vset.pattern.permute.xlu0 0
    %575 = vperm.xlu0 %574, %v549
    %v576 = vpop.permute.xlu0 %575
    %579 = vset.pattern.permute.xlu0 0
    %580 = vperm.xlu0 %579, %v550
    %v581 = vpop.permute.xlu0 %580
    %584 = vset.pattern.permute.xlu0 0
    %585 = vperm.xlu0 %584, %v551
    %v586 = vpop.permute.xlu0 %585
    %589 = vset.pattern.permute.xlu0 0
    %590 = vperm.xlu0 %589, %v552
    %v591 = vpop.permute.xlu0 %590
    %594 = vset.pattern.permute.xlu0 0
    %595 = vperm.xlu0 %594, %v553
    %v596 = vpop.permute.xlu0 %595
    %599 = vset.pattern.permute.xlu0 0
    %600 = vperm.xlu0 %599, %v554
    %v601 = vpop.permute.xlu0 %600
    %604 = vset.pattern.permute.xlu0 0
    %605 = vperm.xlu0 %604, %v555
    %v606 = vpop.permute.xlu0 %605
    %609 = vset.pattern.permute.xlu0 0
    %610 = vperm.xlu0 %609, %v556
    %v611 = vpop.permute.xlu0 %610
    %614 = vset.pattern.permute.xlu0 0
    %615 = vperm.xlu0 %614, %v557
    %v616 = vpop.permute.xlu0 %615
    %619 = vset.pattern.permute.xlu0 0
    %620 = vperm.xlu0 %619, %v558
    %v621 = vpop.permute.xlu0 %620
    %624 = vset.pattern.permute.xlu0 0
    %625 = vperm.xlu0 %624, %v559
    %v626 = vpop.permute.xlu0 %625
    %629 = vset.pattern.permute.xlu0 0
    %630 = vperm.xlu0 %629, %v560
    %v631 = vpop.permute.xlu0 %630
    %634 = vset.pattern.permute.xlu0 0
    %635 = vperm.xlu0 %634, %v561
    %v636 = vpop.permute.xlu0 %635
    %639 = vset.pattern.permute.xlu0 0
    %640 = vperm.xlu0 %639, %v562
    %v641 = vpop.permute.xlu0 %640
    %v643 = vmul.f32 %v531, %v566
    %v644 = vmul.f32 %v532, %v571
    %v645 = vmul.f32 %v533, %v576
    %v646 = vmul.f32 %v534, %v581
    %v647 = vmul.f32 %v535, %v586
    %v648 = vmul.f32 %v536, %v591
    %v649 = vmul.f32 %v537, %v596
    %v650 = vmul.f32 %v538, %v601
    %v651 = vmul.f32 %v539, %v606
    %v652 = vmul.f32 %v540, %v611
    %v653 = vmul.f32 %v541, %v616
    %v654 = vmul.f32 %v542, %v621
    %v655 = vmul.f32 %v543, %v626
    %v656 = vmul.f32 %v544, %v631
    %v657 = vmul.f32 %v545, %v636
    %v658 = vmul.f32 %v546, %v641
    %v659 = vadd.f32 %v643, %v644
    %v660 = vadd.f32 %v659, %v645
    %v661 = vadd.f32 %v660, %v646
    %v662 = vadd.f32 %v661, %v647
    %v663 = vadd.f32 %v662, %v648
    %v664 = vadd.f32 %v663, %v649
    %v665 = vadd.f32 %v664, %v650
    %v666 = vadd.f32 %v665, %v651
    %v667 = vadd.f32 %v666, %v652
    %v668 = vadd.f32 %v667, %v653
    %v669 = vadd.f32 %v668, %v654
    %v670 = vadd.f32 %v669, %v655
    %v671 = vadd.f32 %v670, %v656
    %v672 = vadd.f32 %v671, %v657
    %v673 = vadd.f32 %v672, %v658
    %v674 = vrot.slane %v673, 4
    %v675 = vadd.f32 %v673, %v674
    %v676 = vrot.slane %v675, 2
    %v677 = vadd.f32 %v675, %v676
    %v678 = vrot.slane %v677, 1
    %v679 = vadd.f32 %v677, %v678
    %v680 = vld [vmem:[#allocation2] sm:$0x1]
    %682 = vset.pattern.permute.xlu0 0
    %683 = vperm.xlu0 %682, %v680
    %v684 = vpop.permute.xlu0 %683
    %v686 = vperm.slane %v684, 0
    %v687 = vadd.f32 %v679, %v686
    %688 = vst [vmem:[#allocation3] sm:$0x1] %v687
    // Predicated region
    $region30: #{tpu_custom_call.1} parent=1 // pred_check
      _
    $region31: #{tpu_custom_call.1} parent=1 // pred_check_branch
      %690 = sbr.rel (0) target = $region33
    $region32: #{tpu_custom_call.1} parent=1 // pred_region
      %692 = vsyncadd [#allocation4], 0
      %s694 = sshll.u32 [#allocation3], 4
      %s695 = int_to_ptr.vmem [resolvable:$true] %s694
      %s696 = sshll.u32 %s7, 4
      %s697 = int_to_ptr.hbm [resolvable:$true] %s696
      %699 = dma.vmem_to_hbm [thread:$0]  %s695, 16, %s697, [#allocation4]
    $region33: #{tpu_custom_call.1} parent=1 // pred_fallthru
      _
    // Predicated region
    $region34: #{tpu_custom_call.1} parent=1 // pred_check
      _
    $region35: #{tpu_custom_call.1} parent=1 // pred_check_branch
      %701 = sbr.rel (0) target = $region37
    $region36: #{tpu_custom_call.1} parent=1 // pred_region
      %703 = dma.done [#allocation4], 16
    $region37: #{tpu_custom_call.1} parent=1 // pred_fallthru
      _
    %704 = vsyncpa [#allocation4], 1

</llo_original>
